<compile_context>
chip_gen: v5e
topology: v5e:2x2
jax: 0.10.0
libtpu: 0.0.40
codegen_flags: <defaults>
</compile_context>

<pallas_src>
import functools

import jax
import jax.numpy as jnp
import numpy as np
from jax import lax
from jax.experimental import pallas as pl
from jax.experimental.pallas import tpu as pltpu


def _yolo_loss_kernel(pred_ref, tgt_ref, out_ref, *, S, B, C,
                      lambda_coord, lambda_noobj):
    """One grid step: (N, CH, 8, 128) feature-major tile -> (8, 128) partials."""
    inv_S = jnp.float32(1.0 / S)
    eps = jnp.float32(1e-10)
    lam_c = jnp.float32(lambda_coord)
    lam_n = jnp.float32(lambda_noobj)
    chunks = pred_ref.shape[1]          # CH = TM // 1024 (static)

    def chunk_loss(j):
        # j indexes an (8, 128) sub-plane of every feature; dynamic index on a
        # leading (untiled) dim keeps the working set ~30 vregs for any TM.
        def P(f):
            return pred_ref[f, j].astype(jnp.float32)   # (8, 128) plane

        def T(f):
            return tgt_ref[f, j].astype(jnp.float32)

        conf0_t = T(4)                   # objectness of target box 0
        has_obj = conf0_t > 0.0
        noobj = conf0_t == 0.0

        # ---- classification loss (object cells only; masked below) ----
        class_sq = jnp.zeros_like(conf0_t)
        for c in range(C):
            d = P(5 * B + c) - T(5 * B + c)
            class_sq = class_sq + d * d

        # ---- target box 0 in xyxy (reference uses bbox_target[i], i = cell*B) ----
        t0 = [T(f) for f in range(4)]                    # x, y, w, h
        tcx = t0[0] * inv_S
        tcy = t0[1] * inv_S
        tx1 = tcx - 0.5 * t0[2]
        ty1 = tcy - 0.5 * t0[3]
        tx2 = tcx + 0.5 * t0[2]
        ty2 = tcy + 0.5 * t0[3]
        t_area = (tx2 - tx1) * (ty2 - ty1)

        # ---- per-box pass: each box's planes are loaded ONCE and reused for
        #      the no-obj conf term, the IoU, and the running (first-max)
        #      responsible-box selection ----
        noobj_sq = jnp.zeros_like(conf0_t)
        best_iou = None
        rp = None        # responsible predicted box (x, y, w, h, conf)
        rt = None        # responsible target box   (x, y, w, h)
        for b in range(B):
            pb = [P(5 * b + f) for f in range(5)]
            tb_conf = conf0_t if b == 0 else T(5 * b + 4)
            d = pb[4] - tb_conf
            noobj_sq = noobj_sq + d * d

            pcx = pb[0] * inv_S
            pcy = pb[1] * inv_S
            px1 = pcx - 0.5 * pb[2]
            py1 = pcy - 0.5 * pb[3]
            px2 = pcx + 0.5 * pb[2]
            py2 = pcy + 0.5 * pb[3]
            iw = jnp.maximum(jnp.minimum(px2, tx2) - jnp.maximum(px1, tx1), 0.0)
            ih = jnp.maximum(jnp.minimum(py2, ty2) - jnp.maximum(py1, ty1), 0.0)
            inter = iw * ih
            p_area = (px2 - px1) * (py2 - py1)
            union = p_area + t_area - inter
            # eps guard only protects padded / degenerate cells (union == 0);
            # real object cells effectively divide by the raw union as the
            # reference does.  Exact divide kept — approx reciprocal could flip
            # the argmax in near-tie cases.
            iou_b = inter / jnp.maximum(union, eps)

            if b == 0:
                best_iou = iou_b
                rp = pb
                rt = list(t0)
            else:
                tb = [T(5 * b + f) for f in range(4)]
                better = iou_b > best_iou
                best_iou = jnp.where(better, iou_b, best_iou)
                rp = [jnp.where(better, pb[f], rp[f]) for f in range(5)]
                rt = [jnp.where(better, tb[f], rt[f]) for f in range(4)]

        xy_sq = (rp[0] - rt[0]) ** 2 + (rp[1] - rt[1]) ** 2
        # sqrt of predicted w/h assumes positivity, exactly as the PyTorch original.
        wh_sq = ((jnp.sqrt(rp[2]) - jnp.sqrt(rt[2])) ** 2
                 + (jnp.sqrt(rp[3]) - jnp.sqrt(rt[3])) ** 2)
        obj_sq = (rp[4] - best_iou) ** 2

        obj_loss = class_sq + lam_c * (xy_sq + wh_sq) + obj_sq
        return jnp.where(has_obj, obj_loss,
                         jnp.where(noobj, lam_n * noobj_sq, 0.0))

    acc = chunk_loss(0)
    if chunks > 1:
        acc = lax.fori_loop(1, chunks, lambda j, a: a + chunk_loss(j), acc)
    out_ref[...] = acc                   # (8, 128) lane-dense partial sums


def _round_up(x, m):
    return (x + m - 1) // m * m


def _cdiv(a, b):
    return -(-a // b)


def detect_loss_pallas(pred, target, *, S=7, B=2, C=20,
                       lambda_coord=5.0, lambda_noobj=0.5,
                       cells_per_tile=8192):
    assert cells_per_tile % 1024 == 0 and cells_per_tile >= 1024
    batch = pred.shape[0]
    N = 5 * B + C
    assert pred.shape == (batch, S, S, N) and target.shape == pred.shape
    M = batch * S * S

    # Tile selection: cells per tile is a multiple of 1024 so every (8, 128)
    # chunk is natively aligned.  Whenever there are >= 2048 padded cells we
    # force grid_m >= 2 so both v7x TensorCores get work; tiles are capped at
    # cells_per_tile (8192 f32 -> ~1 MB per input block, ~4 MB double-buffered,
    # well inside every generation's scoped-VMEM limit).
    M_pad_min = _round_up(M, 1024)
    if M_pad_min <= 1024:
        TM = M_pad_min
    else:
        grid_target = max(2, _cdiv(M_pad_min, cells_per_tile))
        TM = _round_up(_cdiv(M_pad_min, grid_target), 1024)
    M_pad = _round_up(M, TM)
    grid_m = M_pad // TM
    CH = TM // 1024                      # 8-sublane chunks per tile

    def to_slab(x):
        x2 = x.reshape(M, N)
        if M_pad != M:
            # padded cells are all-zero: conf == 0 -> contribute exactly 0
            x2 = jnp.pad(x2, ((0, M_pad - M), (0, 0)))
        # Tile-outermost, feature-major, lane-dense: one contiguous HBM block
        # per grid step.  Input dtype is preserved (bf16 stays bf16 over HBM).
        return (x2.reshape(grid_m, TM, N)
                  .transpose(0, 2, 1)
                  .reshape(grid_m, N, CH, 8, 128))

    p5 = to_slab(pred)
    t5 = to_slab(target)

    kernel = functools.partial(
        _yolo_loss_kernel, S=S, B=B, C=C,
        lambda_coord=lambda_coord, lambda_noobj=lambda_noobj)

    partial = pl.pallas_call(
        kernel,
        out_shape=jax.ShapeDtypeStruct((grid_m, 8, 128), jnp.float32),
        grid=(grid_m,),
        in_specs=[pl.BlockSpec((None, N, CH, 8, 128),
                               lambda i: (i, 0, 0, 0, 0)),
                  pl.BlockSpec((None, N, CH, 8, 128),
                               lambda i: (i, 0, 0, 0, 0))],
        out_specs=pl.BlockSpec((None, 8, 128), lambda i: (i, 0, 0)),
        compiler_params=pltpu.CompilerParams(
            dimension_semantics=("parallel",),
            # Ask XLA to fold the wrapper pad/transpose into the input reads
            # instead of materialising a transposed copy of both inputs in HBM.
            allow_input_fusion=[True, True],
            vmem_limit_bytes=32 * 1024 * 1024),
    )(p5, t5)

    # Tiny cross-tile reduction + batch normalisation stay in XLA.
    return jnp.sum(partial) / jnp.float32(batch)


def _reference_loss_numpy(pred, target, S, B, C, lc, ln):
    """Literal numpy port of the PyTorch forward, used as a correctness check."""
    pred = np.asarray(pred, np.float32)
    target = np.asarray(target, np.float32)
    bs = pred.shape[0]
    Nf = 5 * B + C
    coord_mask = target[..., 4] > 0
    noobj_mask = target[..., 4] == 0
    coord_pred = pred[coord_mask].reshape(-1, Nf)
    coord_target = target[coord_mask].reshape(-1, Nf)
    bbox_pred = coord_pred[:, :5 * B].reshape(-1, 5)
    class_pred = coord_pred[:, 5 * B:]
    bbox_target = coord_target[:, :5 * B].reshape(-1, 5)
    class_target = coord_target[:, 5 * B:]
    noobj_pred = pred[noobj_mask].reshape(-1, Nf)
    noobj_target = target[noobj_mask].reshape(-1, Nf)
    conf_idx = [4 + b * 5 for b in range(B)]
    loss_noobj = np.sum((noobj_pred[:, conf_idx] - noobj_target[:, conf_idx]) ** 2)
    loss_xy = loss_wh = loss_obj = 0.0
    for i in range(0, bbox_target.shape[0], B):
        p = bbox_pred[i:i + B]
        p_xyxy = np.zeros((B, 4), np.float32)
        p_xyxy[:, :2] = p[:, :2] / S - 0.5 * p[:, 2:4]
        p_xyxy[:, 2:4] = p[:, :2] / S + 0.5 * p[:, 2:4]
        t = bbox_target[i:i + 1]
        t_xyxy = np.zeros((1, 4), np.float32)
        t_xyxy[:, :2] = t[:, :2] / S - 0.5 * t[:, 2:4]
        t_xyxy[:, 2:4] = t[:, :2] / S + 0.5 * t[:, 2:4]
        lt = np.maximum(p_xyxy[:, None, :2], t_xyxy[None, :, :2])
        rb = np.minimum(p_xyxy[:, None, 2:], t_xyxy[None, :, 2:])
        wh = np.clip(rb - lt, 0.0, None)
        inter = wh[..., 0] * wh[..., 1]
        a1 = (p_xyxy[:, 2] - p_xyxy[:, 0]) * (p_xyxy[:, 3] - p_xyxy[:, 1])
        a2 = (t_xyxy[:, 2] - t_xyxy[:, 0]) * (t_xyxy[:, 3] - t_xyxy[:, 1])
        iou = inter / (a1[:, None] + a2[None, :] - inter)
        r = int(np.argmax(iou[:, 0]))
        max_iou = iou[r, 0]
        bp = bbox_pred[i + r]
        bt = bbox_target[i + r]
        loss_xy += float(np.sum((bp[:2] - bt[:2]) ** 2))
        loss_wh += float(np.sum((np.sqrt(bp[2:4]) - np.sqrt(bt[2:4])) ** 2))
        loss_obj += float((bp[4] - max_iou) ** 2)
    loss_class = float(np.sum((class_pred - class_target) ** 2))
    return (lc * (loss_xy + loss_wh) + loss_obj + ln * loss_noobj + loss_class) / bs


if __name__ == "__main__":
    S, B, C = 7, 2, 20
    N = 5 * B + C

    def make_inputs(key, batch):
        kp, kb, ko, kc = jax.random.split(key, 4)
        # Positive box params so sqrt(w), sqrt(h) stay real (as YOLO assumes).
        pred = jax.random.uniform(kp, (batch, S, S, N), jnp.float32,
                                  minval=0.05, maxval=0.95)
        boxes = jax.random.uniform(kb, (batch, S, S, B, 5), jnp.float32,
                                   minval=0.1, maxval=0.9)
        obj = (jax.random.uniform(ko, (batch, S, S, 1)) > 0.7).astype(jnp.float32)
        boxes = boxes.at[..., 4].set(obj)      # both boxes share cell objectness
        classes = jax.random.uniform(kc, (batch, S, S, C), jnp.float32)
        tgt = jnp.concatenate([boxes.reshape(batch, S, S, 5 * B), classes], -1)
        return pred, tgt

    key = jax.random.PRNGKey(0)
    k1, k2 = jax.random.split(key)

    # Small case: single tile, single 8-sublane chunk.
    pred, target = make_inputs(k1, 2)
    loss_fn = jax.jit(functools.partial(detect_loss_pallas, S=S, B=B, C=C,
                                        lambda_coord=5.0, lambda_noobj=0.5))
    loss = jax.block_until_ready(loss_fn(pred, target))
    ref = _reference_loss_numpy(pred, target, S, B, C, 5.0, 0.5)
    assert np.isfinite(float(loss)), "kernel produced non-finite loss"
    assert np.allclose(float(loss), ref, rtol=1e-4, atol=1e-4), (float(loss), ref)

    # Larger case: exercises the multi-tile grid and the in-kernel chunk loop.
    pred2, target2 = make_inputs(k2, 64)
    loss_fn2 = jax.jit(functools.partial(detect_loss_pallas, S=S, B=B, C=C,
                                         lambda_coord=5.0, lambda_noobj=0.5,
                                         cells_per_tile=2048))
    loss2 = jax.block_until_ready(loss_fn2(pred2, target2))
    ref2 = _reference_loss_numpy(pred2, target2, S, B, C, 5.0, 0.5)
    assert np.isfinite(float(loss2)), "kernel produced non-finite loss"
    assert np.allclose(float(loss2), ref2, rtol=1e-4, atol=1e-4), (float(loss2), ref2)

    print("KERNEL_OK")
</pallas_src>

<mosaic_0001>
module attributes {stable_mosaic.version = 11 : i64} {
  func.func @_yolo_loss_kernel(%arg0: i32, %arg1: memref<1x30x1x8x128xf32, #tpu.memory_space<vmem>>, %arg2: memref<1x30x1x8x128xf32, #tpu.memory_space<vmem>>, %arg3: memref<1x8x128xf32, #tpu.memory_space<vmem>>) attributes {dimension_semantics = [#tpu.dimension_semantics<parallel>], iteration_bounds = array<i64: 1>, scalar_prefetch = 0 : i64, scratch_operands = 0 : i64, tpu.core_type = #tpu.core_type<tc>, window_params = [{transform_indices = @transform_0, window_bounds = array<i64: 1, 30, 1, 8, 128>}, {transform_indices = @transform_1, window_bounds = array<i64: 1, 30, 1, 8, 128>}, {transform_indices = @transform_2, window_bounds = array<i64: 1, 8, 128>}]} {
    %c0 = arith.constant 0 : index
    %c4 = arith.constant 4 : index
    %c0_0 = arith.constant 0 : index
    %c0_1 = arith.constant 0 : index
    %c0_2 = arith.constant 0 : index
    %0 = vector.load %arg2[%c0, %c4, %c0_0, %c0_1, %c0_2] : memref<1x30x1x8x128xf32, #tpu.memory_space<vmem>>, vector<1x1x1x8x128xf32>
    %1 = vector.shape_cast %0 : vector<1x1x1x8x128xf32> to vector<8x128xf32>
    %cst = arith.constant 0.000000e+00 : f32
    %2 = vector.broadcast %cst : f32 to vector<8x128xf32>
    %3 = arith.cmpf ogt, %1, %2 : vector<8x128xf32>
    %cst_3 = arith.constant 0.000000e+00 : f32
    %4 = vector.broadcast %cst_3 : f32 to vector<8x128xf32>
    %5 = arith.cmpf oeq, %1, %4 : vector<8x128xf32>
    %cst_4 = arith.constant 0.000000e+00 : f32
    %6 = vector.broadcast %cst_4 : f32 to vector<8x128xf32>
    %c0_5 = arith.constant 0 : index
    %c10 = arith.constant 10 : index
    %c0_6 = arith.constant 0 : index
    %c0_7 = arith.constant 0 : index
    %c0_8 = arith.constant 0 : index
    %7 = vector.load %arg1[%c0_5, %c10, %c0_6, %c0_7, %c0_8] : memref<1x30x1x8x128xf32, #tpu.memory_space<vmem>>, vector<1x1x1x8x128xf32>
    %8 = vector.shape_cast %7 : vector<1x1x1x8x128xf32> to vector<8x128xf32>
    %c0_9 = arith.constant 0 : index
    %c10_10 = arith.constant 10 : index
    %c0_11 = arith.constant 0 : index
    %c0_12 = arith.constant 0 : index
    %c0_13 = arith.constant 0 : index
    %9 = vector.load %arg2[%c0_9, %c10_10, %c0_11, %c0_12, %c0_13] : memref<1x30x1x8x128xf32, #tpu.memory_space<vmem>>, vector<1x1x1x8x128xf32>
    %10 = vector.shape_cast %9 : vector<1x1x1x8x128xf32> to vector<8x128xf32>
    %11 = arith.subf %8, %10 : vector<8x128xf32>
    %12 = arith.mulf %11, %11 : vector<8x128xf32>
    %13 = arith.addf %6, %12 : vector<8x128xf32>
    %c0_14 = arith.constant 0 : index
    %c11 = arith.constant 11 : index
    %c0_15 = arith.constant 0 : index
    %c0_16 = arith.constant 0 : index
    %c0_17 = arith.constant 0 : index
    %14 = vector.load %arg1[%c0_14, %c11, %c0_15, %c0_16, %c0_17] : memref<1x30x1x8x128xf32, #tpu.memory_space<vmem>>, vector<1x1x1x8x128xf32>
    %15 = vector.shape_cast %14 : vector<1x1x1x8x128xf32> to vector<8x128xf32>
    %c0_18 = arith.constant 0 : index
    %c11_19 = arith.constant 11 : index
    %c0_20 = arith.constant 0 : index
    %c0_21 = arith.constant 0 : index
    %c0_22 = arith.constant 0 : index
    %16 = vector.load %arg2[%c0_18, %c11_19, %c0_20, %c0_21, %c0_22] : memref<1x30x1x8x128xf32, #tpu.memory_space<vmem>>, vector<1x1x1x8x128xf32>
    %17 = vector.shape_cast %16 : vector<1x1x1x8x128xf32> to vector<8x128xf32>
    %18 = arith.subf %15, %17 : vector<8x128xf32>
    %19 = arith.mulf %18, %18 : vector<8x128xf32>
    %20 = arith.addf %13, %19 : vector<8x128xf32>
    %c0_23 = arith.constant 0 : index
    %c12 = arith.constant 12 : index
    %c0_24 = arith.constant 0 : index
    %c0_25 = arith.constant 0 : index
    %c0_26 = arith.constant 0 : index
    %21 = vector.load %arg1[%c0_23, %c12, %c0_24, %c0_25, %c0_26] : memref<1x30x1x8x128xf32, #tpu.memory_space<vmem>>, vector<1x1x1x8x128xf32>
    %22 = vector.shape_cast %21 : vector<1x1x1x8x128xf32> to vector<8x128xf32>
    %c0_27 = arith.constant 0 : index
    %c12_28 = arith.constant 12 : index
    %c0_29 = arith.constant 0 : index
    %c0_30 = arith.constant 0 : index
    %c0_31 = arith.constant 0 : index
    %23 = vector.load %arg2[%c0_27, %c12_28, %c0_29, %c0_30, %c0_31] : memref<1x30x1x8x128xf32, #tpu.memory_space<vmem>>, vector<1x1x1x8x128xf32>
    %24 = vector.shape_cast %23 : vector<1x1x1x8x128xf32> to vector<8x128xf32>
    %25 = arith.subf %22, %24 : vector<8x128xf32>
    %26 = arith.mulf %25, %25 : vector<8x128xf32>
    %27 = arith.addf %20, %26 : vector<8x128xf32>
    %c0_32 = arith.constant 0 : index
    %c13 = arith.constant 13 : index
    %c0_33 = arith.constant 0 : index
    %c0_34 = arith.constant 0 : index
    %c0_35 = arith.constant 0 : index
    %28 = vector.load %arg1[%c0_32, %c13, %c0_33, %c0_34, %c0_35] : memref<1x30x1x8x128xf32, #tpu.memory_space<vmem>>, vector<1x1x1x8x128xf32>
    %29 = vector.shape_cast %28 : vector<1x1x1x8x128xf32> to vector<8x128xf32>
    %c0_36 = arith.constant 0 : index
    %c13_37 = arith.constant 13 : index
    %c0_38 = arith.constant 0 : index
    %c0_39 = arith.constant 0 : index
    %c0_40 = arith.constant 0 : index
    %30 = vector.load %arg2[%c0_36, %c13_37, %c0_38, %c0_39, %c0_40] : memref<1x30x1x8x128xf32, #tpu.memory_space<vmem>>, vector<1x1x1x8x128xf32>
    %31 = vector.shape_cast %30 : vector<1x1x1x8x128xf32> to vector<8x128xf32>
    %32 = arith.subf %29, %31 : vector<8x128xf32>
    %33 = arith.mulf %32, %32 : vector<8x128xf32>
    %34 = arith.addf %27, %33 : vector<8x128xf32>
    %c0_41 = arith.constant 0 : index
    %c14 = arith.constant 14 : index
    %c0_42 = arith.constant 0 : index
    %c0_43 = arith.constant 0 : index
    %c0_44 = arith.constant 0 : index
    %35 = vector.load %arg1[%c0_41, %c14, %c0_42, %c0_43, %c0_44] : memref<1x30x1x8x128xf32, #tpu.memory_space<vmem>>, vector<1x1x1x8x128xf32>
    %36 = vector.shape_cast %35 : vector<1x1x1x8x128xf32> to vector<8x128xf32>
    %c0_45 = arith.constant 0 : index
    %c14_46 = arith.constant 14 : index
    %c0_47 = arith.constant 0 : index
    %c0_48 = arith.constant 0 : index
    %c0_49 = arith.constant 0 : index
    %37 = vector.load %arg2[%c0_45, %c14_46, %c0_47, %c0_48, %c0_49] : memref<1x30x1x8x128xf32, #tpu.memory_space<vmem>>, vector<1x1x1x8x128xf32>
    %38 = vector.shape_cast %37 : vector<1x1x1x8x128xf32> to vector<8x128xf32>
    %39 = arith.subf %36, %38 : vector<8x128xf32>
    %40 = arith.mulf %39, %39 : vector<8x128xf32>
    %41 = arith.addf %34, %40 : vector<8x128xf32>
    %c0_50 = arith.constant 0 : index
    %c15 = arith.constant 15 : index
    %c0_51 = arith.constant 0 : index
    %c0_52 = arith.constant 0 : index
    %c0_53 = arith.constant 0 : index
    %42 = vector.load %arg1[%c0_50, %c15, %c0_51, %c0_52, %c0_53] : memref<1x30x1x8x128xf32, #tpu.memory_space<vmem>>, vector<1x1x1x8x128xf32>
    %43 = vector.shape_cast %42 : vector<1x1x1x8x128xf32> to vector<8x128xf32>
    %c0_54 = arith.constant 0 : index
    %c15_55 = arith.constant 15 : index
    %c0_56 = arith.constant 0 : index
    %c0_57 = arith.constant 0 : index
    %c0_58 = arith.constant 0 : index
    %44 = vector.load %arg2[%c0_54, %c15_55, %c0_56, %c0_57, %c0_58] : memref<1x30x1x8x128xf32, #tpu.memory_space<vmem>>, vector<1x1x1x8x128xf32>
    %45 = vector.shape_cast %44 : vector<1x1x1x8x128xf32> to vector<8x128xf32>
    %46 = arith.subf %43, %45 : vector<8x128xf32>
    %47 = arith.mulf %46, %46 : vector<8x128xf32>
    %48 = arith.addf %41, %47 : vector<8x128xf32>
    %c0_59 = arith.constant 0 : index
    %c16 = arith.constant 16 : index
    %c0_60 = arith.constant 0 : index
    %c0_61 = arith.constant 0 : index
    %c0_62 = arith.constant 0 : index
    %49 = vector.load %arg1[%c0_59, %c16, %c0_60, %c0_61, %c0_62] : memref<1x30x1x8x128xf32, #tpu.memory_space<vmem>>, vector<1x1x1x8x128xf32>
    %50 = vector.shape_cast %49 : vector<1x1x1x8x128xf32> to vector<8x128xf32>
    %c0_63 = arith.constant 0 : index
    %c16_64 = arith.constant 16 : index
    %c0_65 = arith.constant 0 : index
    %c0_66 = arith.constant 0 : index
    %c0_67 = arith.constant 0 : index
    %51 = vector.load %arg2[%c0_63, %c16_64, %c0_65, %c0_66, %c0_67] : memref<1x30x1x8x128xf32, #tpu.memory_space<vmem>>, vector<1x1x1x8x128xf32>
    %52 = vector.shape_cast %51 : vector<1x1x1x8x128xf32> to vector<8x128xf32>
    %53 = arith.subf %50, %52 : vector<8x128xf32>
    %54 = arith.mulf %53, %53 : vector<8x128xf32>
    %55 = arith.addf %48, %54 : vector<8x128xf32>
    %c0_68 = arith.constant 0 : index
    %c17 = arith.constant 17 : index
    %c0_69 = arith.constant 0 : index
    %c0_70 = arith.constant 0 : index
    %c0_71 = arith.constant 0 : index
    %56 = vector.load %arg1[%c0_68, %c17, %c0_69, %c0_70, %c0_71] : memref<1x30x1x8x128xf32, #tpu.memory_space<vmem>>, vector<1x1x1x8x128xf32>
    %57 = vector.shape_cast %56 : vector<1x1x1x8x128xf32> to vector<8x128xf32>
    %c0_72 = arith.constant 0 : index
    %c17_73 = arith.constant 17 : index
    %c0_74 = arith.constant 0 : index
    %c0_75 = arith.constant 0 : index
    %c0_76 = arith.constant 0 : index
    %58 = vector.load %arg2[%c0_72, %c17_73, %c0_74, %c0_75, %c0_76] : memref<1x30x1x8x128xf32, #tpu.memory_space<vmem>>, vector<1x1x1x8x128xf32>
    %59 = vector.shape_cast %58 : vector<1x1x1x8x128xf32> to vector<8x128xf32>
    %60 = arith.subf %57, %59 : vector<8x128xf32>
    %61 = arith.mulf %60, %60 : vector<8x128xf32>
    %62 = arith.addf %55, %61 : vector<8x128xf32>
    %c0_77 = arith.constant 0 : index
    %c18 = arith.constant 18 : index
    %c0_78 = arith.constant 0 : index
    %c0_79 = arith.constant 0 : index
    %c0_80 = arith.constant 0 : index
    %63 = vector.load %arg1[%c0_77, %c18, %c0_78, %c0_79, %c0_80] : memref<1x30x1x8x128xf32, #tpu.memory_space<vmem>>, vector<1x1x1x8x128xf32>
    %64 = vector.shape_cast %63 : vector<1x1x1x8x128xf32> to vector<8x128xf32>
    %c0_81 = arith.constant 0 : index
    %c18_82 = arith.constant 18 : index
    %c0_83 = arith.constant 0 : index
    %c0_84 = arith.constant 0 : index
    %c0_85 = arith.constant 0 : index
    %65 = vector.load %arg2[%c0_81, %c18_82, %c0_83, %c0_84, %c0_85] : memref<1x30x1x8x128xf32, #tpu.memory_space<vmem>>, vector<1x1x1x8x128xf32>
    %66 = vector.shape_cast %65 : vector<1x1x1x8x128xf32> to vector<8x128xf32>
    %67 = arith.subf %64, %66 : vector<8x128xf32>
    %68 = arith.mulf %67, %67 : vector<8x128xf32>
    %69 = arith.addf %62, %68 : vector<8x128xf32>
    %c0_86 = arith.constant 0 : index
    %c19 = arith.constant 19 : index
    %c0_87 = arith.constant 0 : index
    %c0_88 = arith.constant 0 : index
    %c0_89 = arith.constant 0 : index
    %70 = vector.load %arg1[%c0_86, %c19, %c0_87, %c0_88, %c0_89] : memref<1x30x1x8x128xf32, #tpu.memory_space<vmem>>, vector<1x1x1x8x128xf32>
    %71 = vector.shape_cast %70 : vector<1x1x1x8x128xf32> to vector<8x128xf32>
    %c0_90 = arith.constant 0 : index
    %c19_91 = arith.constant 19 : index
    %c0_92 = arith.constant 0 : index
    %c0_93 = arith.constant 0 : index
    %c0_94 = arith.constant 0 : index
    %72 = vector.load %arg2[%c0_90, %c19_91, %c0_92, %c0_93, %c0_94] : memref<1x30x1x8x128xf32, #tpu.memory_space<vmem>>, vector<1x1x1x8x128xf32>
    %73 = vector.shape_cast %72 : vector<1x1x1x8x128xf32> to vector<8x128xf32>
    %74 = arith.subf %71, %73 : vector<8x128xf32>
    %75 = arith.mulf %74, %74 : vector<8x128xf32>
    %76 = arith.addf %69, %75 : vector<8x128xf32>
    %c0_95 = arith.constant 0 : index
    %c20 = arith.constant 20 : index
    %c0_96 = arith.constant 0 : index
    %c0_97 = arith.constant 0 : index
    %c0_98 = arith.constant 0 : index
    %77 = vector.load %arg1[%c0_95, %c20, %c0_96, %c0_97, %c0_98] : memref<1x30x1x8x128xf32, #tpu.memory_space<vmem>>, vector<1x1x1x8x128xf32>
    %78 = vector.shape_cast %77 : vector<1x1x1x8x128xf32> to vector<8x128xf32>
    %c0_99 = arith.constant 0 : index
    %c20_100 = arith.constant 20 : index
    %c0_101 = arith.constant 0 : index
    %c0_102 = arith.constant 0 : index
    %c0_103 = arith.constant 0 : index
    %79 = vector.load %arg2[%c0_99, %c20_100, %c0_101, %c0_102, %c0_103] : memref<1x30x1x8x128xf32, #tpu.memory_space<vmem>>, vector<1x1x1x8x128xf32>
    %80 = vector.shape_cast %79 : vector<1x1x1x8x128xf32> to vector<8x128xf32>
    %81 = arith.subf %78, %80 : vector<8x128xf32>
    %82 = arith.mulf %81, %81 : vector<8x128xf32>
    %83 = arith.addf %76, %82 : vector<8x128xf32>
    %c0_104 = arith.constant 0 : index
    %c21 = arith.constant 21 : index
    %c0_105 = arith.constant 0 : index
    %c0_106 = arith.constant 0 : index
    %c0_107 = arith.constant 0 : index
    %84 = vector.load %arg1[%c0_104, %c21, %c0_105, %c0_106, %c0_107] : memref<1x30x1x8x128xf32, #tpu.memory_space<vmem>>, vector<1x1x1x8x128xf32>
    %85 = vector.shape_cast %84 : vector<1x1x1x8x128xf32> to vector<8x128xf32>
    %c0_108 = arith.constant 0 : index
    %c21_109 = arith.constant 21 : index
    %c0_110 = arith.constant 0 : index
    %c0_111 = arith.constant 0 : index
    %c0_112 = arith.constant 0 : index
    %86 = vector.load %arg2[%c0_108, %c21_109, %c0_110, %c0_111, %c0_112] : memref<1x30x1x8x128xf32, #tpu.memory_space<vmem>>, vector<1x1x1x8x128xf32>
    %87 = vector.shape_cast %86 : vector<1x1x1x8x128xf32> to vector<8x128xf32>
    %88 = arith.subf %85, %87 : vector<8x128xf32>
    %89 = arith.mulf %88, %88 : vector<8x128xf32>
    %90 = arith.addf %83, %89 : vector<8x128xf32>
    %c0_113 = arith.constant 0 : index
    %c22 = arith.constant 22 : index
    %c0_114 = arith.constant 0 : index
    %c0_115 = arith.constant 0 : index
    %c0_116 = arith.constant 0 : index
    %91 = vector.load %arg1[%c0_113, %c22, %c0_114, %c0_115, %c0_116] : memref<1x30x1x8x128xf32, #tpu.memory_space<vmem>>, vector<1x1x1x8x128xf32>
    %92 = vector.shape_cast %91 : vector<1x1x1x8x128xf32> to vector<8x128xf32>
    %c0_117 = arith.constant 0 : index
    %c22_118 = arith.constant 22 : index
    %c0_119 = arith.constant 0 : index
    %c0_120 = arith.constant 0 : index
    %c0_121 = arith.constant 0 : index
    %93 = vector.load %arg2[%c0_117, %c22_118, %c0_119, %c0_120, %c0_121] : memref<1x30x1x8x128xf32, #tpu.memory_space<vmem>>, vector<1x1x1x8x128xf32>
    %94 = vector.shape_cast %93 : vector<1x1x1x8x128xf32> to vector<8x128xf32>
    %95 = arith.subf %92, %94 : vector<8x128xf32>
    %96 = arith.mulf %95, %95 : vector<8x128xf32>
    %97 = arith.addf %90, %96 : vector<8x128xf32>
    %c0_122 = arith.constant 0 : index
    %c23 = arith.constant 23 : index
    %c0_123 = arith.constant 0 : index
    %c0_124 = arith.constant 0 : index
    %c0_125 = arith.constant 0 : index
    %98 = vector.load %arg1[%c0_122, %c23, %c0_123, %c0_124, %c0_125] : memref<1x30x1x8x128xf32, #tpu.memory_space<vmem>>, vector<1x1x1x8x128xf32>
    %99 = vector.shape_cast %98 : vector<1x1x1x8x128xf32> to vector<8x128xf32>
    %c0_126 = arith.constant 0 : index
    %c23_127 = arith.constant 23 : index
    %c0_128 = arith.constant 0 : index
    %c0_129 = arith.constant 0 : index
    %c0_130 = arith.constant 0 : index
    %100 = vector.load %arg2[%c0_126, %c23_127, %c0_128, %c0_129, %c0_130] : memref<1x30x1x8x128xf32, #tpu.memory_space<vmem>>, vector<1x1x1x8x128xf32>
    %101 = vector.shape_cast %100 : vector<1x1x1x8x128xf32> to vector<8x128xf32>
    %102 = arith.subf %99, %101 : vector<8x128xf32>
    %103 = arith.mulf %102, %102 : vector<8x128xf32>
    %104 = arith.addf %97, %103 : vector<8x128xf32>
    %c0_131 = arith.constant 0 : index
    %c24 = arith.constant 24 : index
    %c0_132 = arith.constant 0 : index
    %c0_133 = arith.constant 0 : index
    %c0_134 = arith.constant 0 : index
    %105 = vector.load %arg1[%c0_131, %c24, %c0_132, %c0_133, %c0_134] : memref<1x30x1x8x128xf32, #tpu.memory_space<vmem>>, vector<1x1x1x8x128xf32>
    %106 = vector.shape_cast %105 : vector<1x1x1x8x128xf32> to vector<8x128xf32>
    %c0_135 = arith.constant 0 : index
    %c24_136 = arith.constant 24 : index
    %c0_137 = arith.constant 0 : index
    %c0_138 = arith.constant 0 : index
    %c0_139 = arith.constant 0 : index
    %107 = vector.load %arg2[%c0_135, %c24_136, %c0_137, %c0_138, %c0_139] : memref<1x30x1x8x128xf32, #tpu.memory_space<vmem>>, vector<1x1x1x8x128xf32>
    %108 = vector.shape_cast %107 : vector<1x1x1x8x128xf32> to vector<8x128xf32>
    %109 = arith.subf %106, %108 : vector<8x128xf32>
    %110 = arith.mulf %109, %109 : vector<8x128xf32>
    %111 = arith.addf %104, %110 : vector<8x128xf32>
    %c0_140 = arith.constant 0 : index
    %c25 = arith.constant 25 : index
    %c0_141 = arith.constant 0 : index
    %c0_142 = arith.constant 0 : index
    %c0_143 = arith.constant 0 : index
    %112 = vector.load %arg1[%c0_140, %c25, %c0_141, %c0_142, %c0_143] : memref<1x30x1x8x128xf32, #tpu.memory_space<vmem>>, vector<1x1x1x8x128xf32>
    %113 = vector.shape_cast %112 : vector<1x1x1x8x128xf32> to vector<8x128xf32>
    %c0_144 = arith.constant 0 : index
    %c25_145 = arith.constant 25 : index
    %c0_146 = arith.constant 0 : index
    %c0_147 = arith.constant 0 : index
    %c0_148 = arith.constant 0 : index
    %114 = vector.load %arg2[%c0_144, %c25_145, %c0_146, %c0_147, %c0_148] : memref<1x30x1x8x128xf32, #tpu.memory_space<vmem>>, vector<1x1x1x8x128xf32>
    %115 = vector.shape_cast %114 : vector<1x1x1x8x128xf32> to vector<8x128xf32>
    %116 = arith.subf %113, %115 : vector<8x128xf32>
    %117 = arith.mulf %116, %116 : vector<8x128xf32>
    %118 = arith.addf %111, %117 : vector<8x128xf32>
    %c0_149 = arith.constant 0 : index
    %c26 = arith.constant 26 : index
    %c0_150 = arith.constant 0 : index
    %c0_151 = arith.constant 0 : index
    %c0_152 = arith.constant 0 : index
    %119 = vector.load %arg1[%c0_149, %c26, %c0_150, %c0_151, %c0_152] : memref<1x30x1x8x128xf32, #tpu.memory_space<vmem>>, vector<1x1x1x8x128xf32>
    %120 = vector.shape_cast %119 : vector<1x1x1x8x128xf32> to vector<8x128xf32>
    %c0_153 = arith.constant 0 : index
    %c26_154 = arith.constant 26 : index
    %c0_155 = arith.constant 0 : index
    %c0_156 = arith.constant 0 : index
    %c0_157 = arith.constant 0 : index
    %121 = vector.load %arg2[%c0_153, %c26_154, %c0_155, %c0_156, %c0_157] : memref<1x30x1x8x128xf32, #tpu.memory_space<vmem>>, vector<1x1x1x8x128xf32>
    %122 = vector.shape_cast %121 : vector<1x1x1x8x128xf32> to vector<8x128xf32>
    %123 = arith.subf %120, %122 : vector<8x128xf32>
    %124 = arith.mulf %123, %123 : vector<8x128xf32>
    %125 = arith.addf %118, %124 : vector<8x128xf32>
    %c0_158 = arith.constant 0 : index
    %c27 = arith.constant 27 : index
    %c0_159 = arith.constant 0 : index
    %c0_160 = arith.constant 0 : index
    %c0_161 = arith.constant 0 : index
    %126 = vector.load %arg1[%c0_158, %c27, %c0_159, %c0_160, %c0_161] : memref<1x30x1x8x128xf32, #tpu.memory_space<vmem>>, vector<1x1x1x8x128xf32>
    %127 = vector.shape_cast %126 : vector<1x1x1x8x128xf32> to vector<8x128xf32>
    %c0_162 = arith.constant 0 : index
    %c27_163 = arith.constant 27 : index
    %c0_164 = arith.constant 0 : index
    %c0_165 = arith.constant 0 : index
    %c0_166 = arith.constant 0 : index
    %128 = vector.load %arg2[%c0_162, %c27_163, %c0_164, %c0_165, %c0_166] : memref<1x30x1x8x128xf32, #tpu.memory_space<vmem>>, vector<1x1x1x8x128xf32>
    %129 = vector.shape_cast %128 : vector<1x1x1x8x128xf32> to vector<8x128xf32>
    %130 = arith.subf %127, %129 : vector<8x128xf32>
    %131 = arith.mulf %130, %130 : vector<8x128xf32>
    %132 = arith.addf %125, %131 : vector<8x128xf32>
    %c0_167 = arith.constant 0 : index
    %c28 = arith.constant 28 : index
    %c0_168 = arith.constant 0 : index
    %c0_169 = arith.constant 0 : index
    %c0_170 = arith.constant 0 : index
    %133 = vector.load %arg1[%c0_167, %c28, %c0_168, %c0_169, %c0_170] : memref<1x30x1x8x128xf32, #tpu.memory_space<vmem>>, vector<1x1x1x8x128xf32>
    %134 = vector.shape_cast %133 : vector<1x1x1x8x128xf32> to vector<8x128xf32>
    %c0_171 = arith.constant 0 : index
    %c28_172 = arith.constant 28 : index
    %c0_173 = arith.constant 0 : index
    %c0_174 = arith.constant 0 : index
    %c0_175 = arith.constant 0 : index
    %135 = vector.load %arg2[%c0_171, %c28_172, %c0_173, %c0_174, %c0_175] : memref<1x30x1x8x128xf32, #tpu.memory_space<vmem>>, vector<1x1x1x8x128xf32>
    %136 = vector.shape_cast %135 : vector<1x1x1x8x128xf32> to vector<8x128xf32>
    %137 = arith.subf %134, %136 : vector<8x128xf32>
    %138 = arith.mulf %137, %137 : vector<8x128xf32>
    %139 = arith.addf %132, %138 : vector<8x128xf32>
    %c0_176 = arith.constant 0 : index
    %c29 = arith.constant 29 : index
    %c0_177 = arith.constant 0 : index
    %c0_178 = arith.constant 0 : index
    %c0_179 = arith.constant 0 : index
    %140 = vector.load %arg1[%c0_176, %c29, %c0_177, %c0_178, %c0_179] : memref<1x30x1x8x128xf32, #tpu.memory_space<vmem>>, vector<1x1x1x8x128xf32>
    %141 = vector.shape_cast %140 : vector<1x1x1x8x128xf32> to vector<8x128xf32>
    %c0_180 = arith.constant 0 : index
    %c29_181 = arith.constant 29 : index
    %c0_182 = arith.constant 0 : index
    %c0_183 = arith.constant 0 : index
    %c0_184 = arith.constant 0 : index
    %142 = vector.load %arg2[%c0_180, %c29_181, %c0_182, %c0_183, %c0_184] : memref<1x30x1x8x128xf32, #tpu.memory_space<vmem>>, vector<1x1x1x8x128xf32>
    %143 = vector.shape_cast %142 : vector<1x1x1x8x128xf32> to vector<8x128xf32>
    %144 = arith.subf %141, %143 : vector<8x128xf32>
    %145 = arith.mulf %144, %144 : vector<8x128xf32>
    %146 = arith.addf %139, %145 : vector<8x128xf32>
    %c0_185 = arith.constant 0 : index
    %c0_186 = arith.constant 0 : index
    %c0_187 = arith.constant 0 : index
    %c0_188 = arith.constant 0 : index
    %c0_189 = arith.constant 0 : index
    %147 = vector.load %arg2[%c0_185, %c0_186, %c0_187, %c0_188, %c0_189] : memref<1x30x1x8x128xf32, #tpu.memory_space<vmem>>, vector<1x1x1x8x128xf32>
    %148 = vector.shape_cast %147 : vector<1x1x1x8x128xf32> to vector<8x128xf32>
    %c0_190 = arith.constant 0 : index
    %c1 = arith.constant 1 : index
    %c0_191 = arith.constant 0 : index
    %c0_192 = arith.constant 0 : index
    %c0_193 = arith.constant 0 : index
    %149 = vector.load %arg2[%c0_190, %c1, %c0_191, %c0_192, %c0_193] : memref<1x30x1x8x128xf32, #tpu.memory_space<vmem>>, vector<1x1x1x8x128xf32>
    %150 = vector.shape_cast %149 : vector<1x1x1x8x128xf32> to vector<8x128xf32>
    %c0_194 = arith.constant 0 : index
    %c2 = arith.constant 2 : index
    %c0_195 = arith.constant 0 : index
    %c0_196 = arith.constant 0 : index
    %c0_197 = arith.constant 0 : index
    %151 = vector.load %arg2[%c0_194, %c2, %c0_195, %c0_196, %c0_197] : memref<1x30x1x8x128xf32, #tpu.memory_space<vmem>>, vector<1x1x1x8x128xf32>
    %152 = vector.shape_cast %151 : vector<1x1x1x8x128xf32> to vector<8x128xf32>
    %c0_198 = arith.constant 0 : index
    %c3 = arith.constant 3 : index
    %c0_199 = arith.constant 0 : index
    %c0_200 = arith.constant 0 : index
    %c0_201 = arith.constant 0 : index
    %153 = vector.load %arg2[%c0_198, %c3, %c0_199, %c0_200, %c0_201] : memref<1x30x1x8x128xf32, #tpu.memory_space<vmem>>, vector<1x1x1x8x128xf32>
    %154 = vector.shape_cast %153 : vector<1x1x1x8x128xf32> to vector<8x128xf32>
    %cst_202 = arith.constant 0.142857149 : f32
    %155 = vector.broadcast %cst_202 : f32 to vector<8x128xf32>
    %156 = arith.mulf %148, %155 : vector<8x128xf32>
    %cst_203 = arith.constant 0.142857149 : f32
    %157 = vector.broadcast %cst_203 : f32 to vector<8x128xf32>
    %158 = arith.mulf %150, %157 : vector<8x128xf32>
    %cst_204 = arith.constant 5.000000e-01 : f32
    %159 = vector.broadcast %cst_204 : f32 to vector<8x128xf32>
    %160 = arith.mulf %159, %152 : vector<8x128xf32>
    %161 = arith.subf %156, %160 : vector<8x128xf32>
    %cst_205 = arith.constant 5.000000e-01 : f32
    %162 = vector.broadcast %cst_205 : f32 to vector<8x128xf32>
    %163 = arith.mulf %162, %154 : vector<8x128xf32>
    %164 = arith.subf %158, %163 : vector<8x128xf32>
    %cst_206 = arith.constant 5.000000e-01 : f32
    %165 = vector.broadcast %cst_206 : f32 to vector<8x128xf32>
    %166 = arith.mulf %165, %152 : vector<8x128xf32>
    %167 = arith.addf %156, %166 : vector<8x128xf32>
    %cst_207 = arith.constant 5.000000e-01 : f32
    %168 = vector.broadcast %cst_207 : f32 to vector<8x128xf32>
    %169 = arith.mulf %168, %154 : vector<8x128xf32>
    %170 = arith.addf %158, %169 : vector<8x128xf32>
    %171 = arith.subf %167, %161 : vector<8x128xf32>
    %172 = arith.subf %170, %164 : vector<8x128xf32>
    %173 = arith.mulf %171, %172 : vector<8x128xf32>
    %cst_208 = arith.constant 0.000000e+00 : f32
    %174 = vector.broadcast %cst_208 : f32 to vector<8x128xf32>
    %c0_209 = arith.constant 0 : index
    %c0_210 = arith.constant 0 : index
    %c0_211 = arith.constant 0 : index
    %c0_212 = arith.constant 0 : index
    %c0_213 = arith.constant 0 : index
    %175 = vector.load %arg1[%c0_209, %c0_210, %c0_211, %c0_212, %c0_213] : memref<1x30x1x8x128xf32, #tpu.memory_space<vmem>>, vector<1x1x1x8x128xf32>
    %176 = vector.shape_cast %175 : vector<1x1x1x8x128xf32> to vector<8x128xf32>
    %c0_214 = arith.constant 0 : index
    %c1_215 = arith.constant 1 : index
    %c0_216 = arith.constant 0 : index
    %c0_217 = arith.constant 0 : index
    %c0_218 = arith.constant 0 : index
    %177 = vector.load %arg1[%c0_214, %c1_215, %c0_216, %c0_217, %c0_218] : memref<1x30x1x8x128xf32, #tpu.memory_space<vmem>>, vector<1x1x1x8x128xf32>
    %178 = vector.shape_cast %177 : vector<1x1x1x8x128xf32> to vector<8x128xf32>
    %c0_219 = arith.constant 0 : index
    %c2_220 = arith.constant 2 : index
    %c0_221 = arith.constant 0 : index
    %c0_222 = arith.constant 0 : index
    %c0_223 = arith.constant 0 : index
    %179 = vector.load %arg1[%c0_219, %c2_220, %c0_221, %c0_222, %c0_223] : memref<1x30x1x8x128xf32, #tpu.memory_space<vmem>>, vector<1x1x1x8x128xf32>
    %180 = vector.shape_cast %179 : vector<1x1x1x8x128xf32> to vector<8x128xf32>
    %c0_224 = arith.constant 0 : index
    %c3_225 = arith.constant 3 : index
    %c0_226 = arith.constant 0 : index
    %c0_227 = arith.constant 0 : index
    %c0_228 = arith.constant 0 : index
    %181 = vector.load %arg1[%c0_224, %c3_225, %c0_226, %c0_227, %c0_228] : memref<1x30x1x8x128xf32, #tpu.memory_space<vmem>>, vector<1x1x1x8x128xf32>
    %182 = vector.shape_cast %181 : vector<1x1x1x8x128xf32> to vector<8x128xf32>
    %c0_229 = arith.constant 0 : index
    %c4_230 = arith.constant 4 : index
    %c0_231 = arith.constant 0 : index
    %c0_232 = arith.constant 0 : index
    %c0_233 = arith.constant 0 : index
    %183 = vector.load %arg1[%c0_229, %c4_230, %c0_231, %c0_232, %c0_233] : memref<1x30x1x8x128xf32, #tpu.memory_space<vmem>>, vector<1x1x1x8x128xf32>
    %184 = vector.shape_cast %183 : vector<1x1x1x8x128xf32> to vector<8x128xf32>
    %185 = arith.subf %184, %1 : vector<8x128xf32>
    %186 = arith.mulf %185, %185 : vector<8x128xf32>
    %187 = arith.addf %174, %186 : vector<8x128xf32>
    %cst_234 = arith.constant 0.142857149 : f32
    %188 = vector.broadcast %cst_234 : f32 to vector<8x128xf32>
    %189 = arith.mulf %176, %188 : vector<8x128xf32>
    %cst_235 = arith.constant 0.142857149 : f32
    %190 = vector.broadcast %cst_235 : f32 to vector<8x128xf32>
    %191 = arith.mulf %178, %190 : vector<8x128xf32>
    %cst_236 = arith.constant 5.000000e-01 : f32
    %192 = vector.broadcast %cst_236 : f32 to vector<8x128xf32>
    %193 = arith.mulf %192, %180 : vector<8x128xf32>
    %194 = arith.subf %189, %193 : vector<8x128xf32>
    %cst_237 = arith.constant 5.000000e-01 : f32
    %195 = vector.broadcast %cst_237 : f32 to vector<8x128xf32>
    %196 = arith.mulf %195, %182 : vector<8x128xf32>
    %197 = arith.subf %191, %196 : vector<8x128xf32>
    %cst_238 = arith.constant 5.000000e-01 : f32
    %198 = vector.broadcast %cst_238 : f32 to vector<8x128xf32>
    %199 = arith.mulf %198, %180 : vector<8x128xf32>
    %200 = arith.addf %189, %199 : vector<8x128xf32>
    %cst_239 = arith.constant 5.000000e-01 : f32
    %201 = vector.broadcast %cst_239 : f32 to vector<8x128xf32>
    %202 = arith.mulf %201, %182 : vector<8x128xf32>
    %203 = arith.addf %191, %202 : vector<8x128xf32>
    %204 = arith.minimumf %200, %167 : vector<8x128xf32>
    %205 = arith.maximumf %194, %161 : vector<8x128xf32>
    %206 = arith.subf %204, %205 : vector<8x128xf32>
    %cst_240 = arith.constant 0.000000e+00 : f32
    %207 = vector.broadcast %cst_240 : f32 to vector<8x128xf32>
    %208 = arith.maximumf %206, %207 : vector<8x128xf32>
    %209 = arith.minimumf %203, %170 : vector<8x128xf32>
    %210 = arith.maximumf %197, %164 : vector<8x128xf32>
    %211 = arith.subf %209, %210 : vector<8x128xf32>
    %cst_241 = arith.constant 0.000000e+00 : f32
    %212 = vector.broadcast %cst_241 : f32 to vector<8x128xf32>
    %213 = arith.maximumf %211, %212 : vector<8x128xf32>
    %214 = arith.mulf %208, %213 : vector<8x128xf32>
    %215 = arith.subf %200, %194 : vector<8x128xf32>
    %216 = arith.subf %203, %197 : vector<8x128xf32>
    %217 = arith.mulf %215, %216 : vector<8x128xf32>
    %218 = arith.addf %217, %173 : vector<8x128xf32>
    %219 = arith.subf %218, %214 : vector<8x128xf32>
    %cst_242 = arith.constant 1.000000e-10 : f32
    %220 = vector.broadcast %cst_242 : f32 to vector<8x128xf32>
    %221 = arith.maximumf %219, %220 : vector<8x128xf32>
    %222 = arith.divf %214, %221 : vector<8x128xf32>
    %c0_243 = arith.constant 0 : index
    %c5 = arith.constant 5 : index
    %c0_244 = arith.constant 0 : index
    %c0_245 = arith.constant 0 : index
    %c0_246 = arith.constant 0 : index
    %223 = vector.load %arg1[%c0_243, %c5, %c0_244, %c0_245, %c0_246] : memref<1x30x1x8x128xf32, #tpu.memory_space<vmem>>, vector<1x1x1x8x128xf32>
    %224 = vector.shape_cast %223 : vector<1x1x1x8x128xf32> to vector<8x128xf32>
    %c0_247 = arith.constant 0 : index
    %c6 = arith.constant 6 : index
    %c0_248 = arith.constant 0 : index
    %c0_249 = arith.constant 0 : index
    %c0_250 = arith.constant 0 : index
    %225 = vector.load %arg1[%c0_247, %c6, %c0_248, %c0_249, %c0_250] : memref<1x30x1x8x128xf32, #tpu.memory_space<vmem>>, vector<1x1x1x8x128xf32>
    %226 = vector.shape_cast %225 : vector<1x1x1x8x128xf32> to vector<8x128xf32>
    %c0_251 = arith.constant 0 : index
    %c7 = arith.constant 7 : index
    %c0_252 = arith.constant 0 : index
    %c0_253 = arith.constant 0 : index
    %c0_254 = arith.constant 0 : index
    %227 = vector.load %arg1[%c0_251, %c7, %c0_252, %c0_253, %c0_254] : memref<1x30x1x8x128xf32, #tpu.memory_space<vmem>>, vector<1x1x1x8x128xf32>
    %228 = vector.shape_cast %227 : vector<1x1x1x8x128xf32> to vector<8x128xf32>
    %c0_255 = arith.constant 0 : index
    %c8 = arith.constant 8 : index
    %c0_256 = arith.constant 0 : index
    %c0_257 = arith.constant 0 : index
    %c0_258 = arith.constant 0 : index
    %229 = vector.load %arg1[%c0_255, %c8, %c0_256, %c0_257, %c0_258] : memref<1x30x1x8x128xf32, #tpu.memory_space<vmem>>, vector<1x1x1x8x128xf32>
    %230 = vector.shape_cast %229 : vector<1x1x1x8x128xf32> to vector<8x128xf32>
    %c0_259 = arith.constant 0 : index
    %c9 = arith.constant 9 : index
    %c0_260 = arith.constant 0 : index
    %c0_261 = arith.constant 0 : index
    %c0_262 = arith.constant 0 : index
    %231 = vector.load %arg1[%c0_259, %c9, %c0_260, %c0_261, %c0_262] : memref<1x30x1x8x128xf32, #tpu.memory_space<vmem>>, vector<1x1x1x8x128xf32>
    %232 = vector.shape_cast %231 : vector<1x1x1x8x128xf32> to vector<8x128xf32>
    %c0_263 = arith.constant 0 : index
    %c9_264 = arith.constant 9 : index
    %c0_265 = arith.constant 0 : index
    %c0_266 = arith.constant 0 : index
    %c0_267 = arith.constant 0 : index
    %233 = vector.load %arg2[%c0_263, %c9_264, %c0_265, %c0_266, %c0_267] : memref<1x30x1x8x128xf32, #tpu.memory_space<vmem>>, vector<1x1x1x8x128xf32>
    %234 = vector.shape_cast %233 : vector<1x1x1x8x128xf32> to vector<8x128xf32>
    %235 = arith.subf %232, %234 : vector<8x128xf32>
    %236 = arith.mulf %235, %235 : vector<8x128xf32>
    %237 = arith.addf %187, %236 : vector<8x128xf32>
    %cst_268 = arith.constant 0.142857149 : f32
    %238 = vector.broadcast %cst_268 : f32 to vector<8x128xf32>
    %239 = arith.mulf %224, %238 : vector<8x128xf32>
    %cst_269 = arith.constant 0.142857149 : f32
    %240 = vector.broadcast %cst_269 : f32 to vector<8x128xf32>
    %241 = arith.mulf %226, %240 : vector<8x128xf32>
    %cst_270 = arith.constant 5.000000e-01 : f32
    %242 = vector.broadcast %cst_270 : f32 to vector<8x128xf32>
    %243 = arith.mulf %242, %228 : vector<8x128xf32>
    %244 = arith.subf %239, %243 : vector<8x128xf32>
    %cst_271 = arith.constant 5.000000e-01 : f32
    %245 = vector.broadcast %cst_271 : f32 to vector<8x128xf32>
    %246 = arith.mulf %245, %230 : vector<8x128xf32>
    %247 = arith.subf %241, %246 : vector<8x128xf32>
    %cst_272 = arith.constant 5.000000e-01 : f32
    %248 = vector.broadcast %cst_272 : f32 to vector<8x128xf32>
    %249 = arith.mulf %248, %228 : vector<8x128xf32>
    %250 = arith.addf %239, %249 : vector<8x128xf32>
    %cst_273 = arith.constant 5.000000e-01 : f32
    %251 = vector.broadcast %cst_273 : f32 to vector<8x128xf32>
    %252 = arith.mulf %251, %230 : vector<8x128xf32>
    %253 = arith.addf %241, %252 : vector<8x128xf32>
    %254 = arith.minimumf %250, %167 : vector<8x128xf32>
    %255 = arith.maximumf %244, %161 : vector<8x128xf32>
    %256 = arith.subf %254, %255 : vector<8x128xf32>
    %cst_274 = arith.constant 0.000000e+00 : f32
    %257 = vector.broadcast %cst_274 : f32 to vector<8x128xf32>
    %258 = arith.maximumf %256, %257 : vector<8x128xf32>
    %259 = arith.minimumf %253, %170 : vector<8x128xf32>
    %260 = arith.maximumf %247, %164 : vector<8x128xf32>
    %261 = arith.subf %259, %260 : vector<8x128xf32>
    %cst_275 = arith.constant 0.000000e+00 : f32
    %262 = vector.broadcast %cst_275 : f32 to vector<8x128xf32>
    %263 = arith.maximumf %261, %262 : vector<8x128xf32>
    %264 = arith.mulf %258, %263 : vector<8x128xf32>
    %265 = arith.subf %250, %244 : vector<8x128xf32>
    %266 = arith.subf %253, %247 : vector<8x128xf32>
    %267 = arith.mulf %265, %266 : vector<8x128xf32>
    %268 = arith.addf %267, %173 : vector<8x128xf32>
    %269 = arith.subf %268, %264 : vector<8x128xf32>
    %cst_276 = arith.constant 1.000000e-10 : f32
    %270 = vector.broadcast %cst_276 : f32 to vector<8x128xf32>
    %271 = arith.maximumf %269, %270 : vector<8x128xf32>
    %272 = arith.divf %264, %271 : vector<8x128xf32>
    %c0_277 = arith.constant 0 : index
    %c5_278 = arith.constant 5 : index
    %c0_279 = arith.constant 0 : index
    %c0_280 = arith.constant 0 : index
    %c0_281 = arith.constant 0 : index
    %273 = vector.load %arg2[%c0_277, %c5_278, %c0_279, %c0_280, %c0_281] : memref<1x30x1x8x128xf32, #tpu.memory_space<vmem>>, vector<1x1x1x8x128xf32>
    %274 = vector.shape_cast %273 : vector<1x1x1x8x128xf32> to vector<8x128xf32>
    %c0_282 = arith.constant 0 : index
    %c6_283 = arith.constant 6 : index
    %c0_284 = arith.constant 0 : index
    %c0_285 = arith.constant 0 : index
    %c0_286 = arith.constant 0 : index
    %275 = vector.load %arg2[%c0_282, %c6_283, %c0_284, %c0_285, %c0_286] : memref<1x30x1x8x128xf32, #tpu.memory_space<vmem>>, vector<1x1x1x8x128xf32>
    %276 = vector.shape_cast %275 : vector<1x1x1x8x128xf32> to vector<8x128xf32>
    %c0_287 = arith.constant 0 : index
    %c7_288 = arith.constant 7 : index
    %c0_289 = arith.constant 0 : index
    %c0_290 = arith.constant 0 : index
    %c0_291 = arith.constant 0 : index
    %277 = vector.load %arg2[%c0_287, %c7_288, %c0_289, %c0_290, %c0_291] : memref<1x30x1x8x128xf32, #tpu.memory_space<vmem>>, vector<1x1x1x8x128xf32>
    %278 = vector.shape_cast %277 : vector<1x1x1x8x128xf32> to vector<8x128xf32>
    %c0_292 = arith.constant 0 : index
    %c8_293 = arith.constant 8 : index
    %c0_294 = arith.constant 0 : index
    %c0_295 = arith.constant 0 : index
    %c0_296 = arith.constant 0 : index
    %279 = vector.load %arg2[%c0_292, %c8_293, %c0_294, %c0_295, %c0_296] : memref<1x30x1x8x128xf32, #tpu.memory_space<vmem>>, vector<1x1x1x8x128xf32>
    %280 = vector.shape_cast %279 : vector<1x1x1x8x128xf32> to vector<8x128xf32>
    %281 = arith.cmpf ogt, %272, %222 : vector<8x128xf32>
    %282 = arith.select %281, %272, %222 : vector<8x128xi1>, vector<8x128xf32>
    %283 = arith.select %281, %224, %176 : vector<8x128xi1>, vector<8x128xf32>
    %284 = arith.select %281, %226, %178 : vector<8x128xi1>, vector<8x128xf32>
    %285 = arith.select %281, %228, %180 : vector<8x128xi1>, vector<8x128xf32>
    %286 = arith.select %281, %230, %182 : vector<8x128xi1>, vector<8x128xf32>
    %287 = arith.select %281, %232, %184 : vector<8x128xi1>, vector<8x128xf32>
    %288 = arith.select %281, %274, %148 : vector<8x128xi1>, vector<8x128xf32>
    %289 = arith.select %281, %276, %150 : vector<8x128xi1>, vector<8x128xf32>
    %290 = arith.select %281, %278, %152 : vector<8x128xi1>, vector<8x128xf32>
    %291 = arith.select %281, %280, %154 : vector<8x128xi1>, vector<8x128xf32>
    %292 = arith.subf %283, %288 : vector<8x128xf32>
    %293 = arith.mulf %292, %292 : vector<8x128xf32>
    %294 = arith.subf %284, %289 : vector<8x128xf32>
    %295 = arith.mulf %294, %294 : vector<8x128xf32>
    %296 = arith.addf %293, %295 : vector<8x128xf32>
    %297 = math.sqrt %285 : vector<8x128xf32>
    %298 = math.sqrt %290 : vector<8x128xf32>
    %299 = arith.subf %297, %298 : vector<8x128xf32>
    %300 = arith.mulf %299, %299 : vector<8x128xf32>
    %301 = math.sqrt %286 : vector<8x128xf32>
    %302 = math.sqrt %291 : vector<8x128xf32>
    %303 = arith.subf %301, %302 : vector<8x128xf32>
    %304 = arith.mulf %303, %303 : vector<8x128xf32>
    %305 = arith.addf %300, %304 : vector<8x128xf32>
    %306 = arith.subf %287, %282 : vector<8x128xf32>
    %307 = arith.mulf %306, %306 : vector<8x128xf32>
    %308 = arith.addf %296, %305 : vector<8x128xf32>
    %cst_297 = arith.constant 5.000000e+00 : f32
    %309 = vector.broadcast %cst_297 : f32 to vector<8x128xf32>
    %310 = arith.mulf %309, %308 : vector<8x128xf32>
    %311 = arith.addf %146, %310 : vector<8x128xf32>
    %312 = arith.addf %311, %307 : vector<8x128xf32>
    %cst_298 = arith.constant 5.000000e-01 : f32
    %313 = vector.broadcast %cst_298 : f32 to vector<8x128xf32>
    %314 = arith.mulf %313, %237 : vector<8x128xf32>
    %cst_299 = arith.constant 0.000000e+00 : f32
    %315 = vector.broadcast %cst_299 : f32 to vector<8x128xf32>
    %316 = arith.select %5, %314, %315 : vector<8x128xi1>, vector<8x128xf32>
    %317 = arith.select %3, %312, %316 : vector<8x128xi1>, vector<8x128xf32>
    %c0_300 = arith.constant 0 : index
    %c0_301 = arith.constant 0 : index
    %c0_302 = arith.constant 0 : index
    %318 = vector.load %arg3[%c0_300, %c0_301, %c0_302] : memref<1x8x128xf32, #tpu.memory_space<vmem>>, vector<1x8x128xf32>
    %319 = vector.shape_cast %318 : vector<1x8x128xf32> to vector<8x128xf32>
    %320 = vector.shape_cast %317 : vector<8x128xf32> to vector<1x8x128xf32>
    tpu.vector_store %arg3[%c0_300, %c0_301, %c0_302], %320 {strides = array<i32>} : memref<1x8x128xf32, #tpu.memory_space<vmem>>, vector<1x8x128xf32>,
    return
  }
  func.func @transform_0(%arg0: i32) -> (i32, i32, i32, i32, i32) {
    %c0_i32 = arith.constant 0 : i32
    %c0_i32_0 = arith.constant 0 : i32
    %c0_i32_1 = arith.constant 0 : i32
    %c0_i32_2 = arith.constant 0 : i32
    %c0_i32_3 = arith.constant 0 : i32
    return %arg0, %c0_i32, %c0_i32_0, %c0_i32_1, %c0_i32_2 : i32, i32, i32, i32, i32
  }
  func.func @transform_1(%arg0: i32) -> (i32, i32, i32, i32, i32) {
    %c0_i32 = arith.constant 0 : i32
    %c0_i32_0 = arith.constant 0 : i32
    %c0_i32_1 = arith.constant 0 : i32
    %c0_i32_2 = arith.constant 0 : i32
    %c0_i32_3 = arith.constant 0 : i32
    return %arg0, %c0_i32, %c0_i32_0, %c0_i32_1, %c0_i32_2 : i32, i32, i32, i32, i32
  }
  func.func @transform_2(%arg0: i32) -> (i32, i32, i32) {
    %c0_i32 = arith.constant 0 : i32
    %c0_i32_0 = arith.constant 0 : i32
    %c0_i32_1 = arith.constant 0 : i32
    return %arg0, %c0_i32, %c0_i32_0 : i32, i32, i32
  }
}

</mosaic_0001>

<llo_original>
// kernel: detect_loss_pallas.1
$region0: #{detect_loss_pallas.1}
  #allocation0 [shape = 'u32[]', space=smem, size = 0x4, offset = 0x4, fixed_abs, tag = 'smem constant byte address 0x4 - core index']
  #allocation1 [shape = 'u32[72,128]{1,0:T(1,128)}', space=vmem, size = 0x9000, scoped, tag = 'internal scratch']
  %s0 = inlined_call_operand.vmem [shape: f32[1,30,1,8,128], index: 0, kind: input, shape index: {}]
  %s1 = inlined_call_operand.vmem [shape: f32[1,30,1,8,128], index: 1, kind: input, shape index: {}]
  %s2 = inlined_call_operand.vmem [shape: f32[1,8,128], index: 2, kind: output, shape index: {}]
  %s3 = sld [smem:[#allocation0]]
  $region18: #{detect_loss_pallas.1} parent=0
    _
  %s5 = ssub.s32 1, %s3
  %s6 = scalar_select 0, %s5, %s3
  // Predicated region
  $region2: #{detect_loss_pallas.1} parent=0 // pred_check
    _
  $region3: #{detect_loss_pallas.1} parent=0 // pred_check_branch
    %8 = sbr.rel (0) target = $region5
  $region4: #{detect_loss_pallas.1} parent=0 // pred_region
    _
  $region5: #{detect_loss_pallas.1} parent=0 // pred_fallthru
    _
  // Predicated region
  $region6: #{detect_loss_pallas.1} parent=0 // pred_check
    _
  $region7: #{detect_loss_pallas.1} parent=0 // pred_check_branch
    %10 = sbr.rel (0) target = $region9
  $region8: #{detect_loss_pallas.1} parent=0 // pred_region
    _
  $region9: #{detect_loss_pallas.1} parent=0 // pred_fallthru
    _
  %s11 = scalar_lea.vmem %s1, 32
  %v12 = vld [vmem:[%s11] sm:$0xff]
  %vm13 = vcmp.gt.f32.partialorder %v12, 0.0
  %vm14 = vcmp.eq.f32.partialorder %v12, 0.0
  %s15 = scalar_lea.vmem %s0, 80
  %v16 = vld [vmem:[%s15] sm:$0xff]
  %s17 = scalar_lea.vmem %s1, 80
  %v18 = vld [vmem:[%s17] sm:$0xff]
  %v19 = vsub.f32 %v16, %v18
  %v20 = vmul.f32 %v19, %v19
  %v21 = vadd.f32 %v20, 0.0
  %s22 = scalar_lea.vmem %s0, 88
  %v23 = vld [vmem:[%s22] sm:$0xff]
  %s24 = scalar_lea.vmem %s1, 88
  %v25 = vld [vmem:[%s24] sm:$0xff]
  %v26 = vsub.f32 %v23, %v25
  %v27 = vmul.f32 %v26, %v26
  %v28 = vadd.f32 %v21, %v27
  %s29 = scalar_lea.vmem %s0, 96
  %v30 = vld [vmem:[%s29] sm:$0xff]
  %s31 = scalar_lea.vmem %s1, 96
  %v32 = vld [vmem:[%s31] sm:$0xff]
  %v33 = vsub.f32 %v30, %v32
  %v34 = vmul.f32 %v33, %v33
  %v35 = vadd.f32 %v28, %v34
  %s36 = scalar_lea.vmem %s0, 104
  %v37 = vld [vmem:[%s36] sm:$0xff]
  %s38 = scalar_lea.vmem %s1, 104
  %v39 = vld [vmem:[%s38] sm:$0xff]
  %v40 = vsub.f32 %v37, %v39
  %v41 = vmul.f32 %v40, %v40
  %v42 = vadd.f32 %v35, %v41
  %s43 = scalar_lea.vmem %s0, 112
  %v44 = vld [vmem:[%s43] sm:$0xff]
  %s45 = scalar_lea.vmem %s1, 112
  %v46 = vld [vmem:[%s45] sm:$0xff]
  %v47 = vsub.f32 %v44, %v46
  %v48 = vmul.f32 %v47, %v47
  %v49 = vadd.f32 %v42, %v48
  %s50 = scalar_lea.vmem %s0, 120
  %v51 = vld [vmem:[%s50] sm:$0xff]
  %s52 = scalar_lea.vmem %s1, 120
  %v53 = vld [vmem:[%s52] sm:$0xff]
  %v54 = vsub.f32 %v51, %v53
  %v55 = vmul.f32 %v54, %v54
  %v56 = vadd.f32 %v49, %v55
  %s57 = scalar_lea.vmem %s0, 128
  %v58 = vld [vmem:[%s57] sm:$0xff]
  %s59 = scalar_lea.vmem %s1, 128
  %v60 = vld [vmem:[%s59] sm:$0xff]
  %v61 = vsub.f32 %v58, %v60
  %v62 = vmul.f32 %v61, %v61
  %v63 = vadd.f32 %v56, %v62
  %s64 = scalar_lea.vmem %s0, 136
  %v65 = vld [vmem:[%s64] sm:$0xff]
  %s66 = scalar_lea.vmem %s1, 136
  %v67 = vld [vmem:[%s66] sm:$0xff]
  %v68 = vsub.f32 %v65, %v67
  %v69 = vmul.f32 %v68, %v68
  %v70 = vadd.f32 %v63, %v69
  %s71 = scalar_lea.vmem %s0, 144
  %v72 = vld [vmem:[%s71] sm:$0xff]
  %s73 = scalar_lea.vmem %s1, 144
  %v74 = vld [vmem:[%s73] sm:$0xff]
  %v75 = vsub.f32 %v72, %v74
  %v76 = vmul.f32 %v75, %v75
  %v77 = vadd.f32 %v70, %v76
  %s78 = scalar_lea.vmem %s0, 152
  %v79 = vld [vmem:[%s78] sm:$0xff]
  %s80 = scalar_lea.vmem %s1, 152
  %v81 = vld [vmem:[%s80] sm:$0xff]
  %v82 = vsub.f32 %v79, %v81
  %v83 = vmul.f32 %v82, %v82
  %v84 = vadd.f32 %v77, %v83
  %s85 = scalar_lea.vmem %s0, 160
  %v86 = vld [vmem:[%s85] sm:$0xff]
  %s87 = scalar_lea.vmem %s1, 160
  %v88 = vld [vmem:[%s87] sm:$0xff]
  %v89 = vsub.f32 %v86, %v88
  %v90 = vmul.f32 %v89, %v89
  %v91 = vadd.f32 %v84, %v90
  %s92 = scalar_lea.vmem %s0, 168
  %v93 = vld [vmem:[%s92] sm:$0xff]
  %s94 = scalar_lea.vmem %s1, 168
  %v95 = vld [vmem:[%s94] sm:$0xff]
  %v96 = vsub.f32 %v93, %v95
  %v97 = vmul.f32 %v96, %v96
  %v98 = vadd.f32 %v91, %v97
  %s99 = scalar_lea.vmem %s0, 176
  %v100 = vld [vmem:[%s99] sm:$0xff]
  %s101 = scalar_lea.vmem %s1, 176
  %v102 = vld [vmem:[%s101] sm:$0xff]
  %v103 = vsub.f32 %v100, %v102
  %v104 = vmul.f32 %v103, %v103
  %v105 = vadd.f32 %v98, %v104
  %s106 = scalar_lea.vmem %s0, 184
  %v107 = vld [vmem:[%s106] sm:$0xff]
  %s108 = scalar_lea.vmem %s1, 184
  %v109 = vld [vmem:[%s108] sm:$0xff]
  %v110 = vsub.f32 %v107, %v109
  %v111 = vmul.f32 %v110, %v110
  %v112 = vadd.f32 %v105, %v111
  %s113 = scalar_lea.vmem %s0, 192
  %v114 = vld [vmem:[%s113] sm:$0xff]
  %s115 = scalar_lea.vmem %s1, 192
  %v116 = vld [vmem:[%s115] sm:$0xff]
  %v117 = vsub.f32 %v114, %v116
  %v118 = vmul.f32 %v117, %v117
  %v119 = vadd.f32 %v112, %v118
  %s120 = scalar_lea.vmem %s0, 200
  %v121 = vld [vmem:[%s120] sm:$0xff]
  %s122 = scalar_lea.vmem %s1, 200
  %v123 = vld [vmem:[%s122] sm:$0xff]
  %v124 = vsub.f32 %v121, %v123
  %v125 = vmul.f32 %v124, %v124
  %v126 = vadd.f32 %v119, %v125
  %s127 = scalar_lea.vmem %s0, 208
  %v128 = vld [vmem:[%s127] sm:$0xff]
  %s129 = scalar_lea.vmem %s1, 208
  %v130 = vld [vmem:[%s129] sm:$0xff]
  %v131 = vsub.f32 %v128, %v130
  %v132 = vmul.f32 %v131, %v131
  %v133 = vadd.f32 %v126, %v132
  %s134 = scalar_lea.vmem %s0, 216
  %v135 = vld [vmem:[%s134] sm:$0xff]
  %s136 = scalar_lea.vmem %s1, 216
  %v137 = vld [vmem:[%s136] sm:$0xff]
  %v138 = vsub.f32 %v135, %v137
  %v139 = vmul.f32 %v138, %v138
  %v140 = vadd.f32 %v133, %v139
  %s141 = scalar_lea.vmem %s0, 224
  %v142 = vld [vmem:[%s141] sm:$0xff]
  %s143 = scalar_lea.vmem %s1, 224
  %v144 = vld [vmem:[%s143] sm:$0xff]
  %v145 = vsub.f32 %v142, %v144
  %v146 = vmul.f32 %v145, %v145
  %v147 = vadd.f32 %v140, %v146
  %s148 = scalar_lea.vmem %s0, 232
  %v149 = vld [vmem:[%s148] sm:$0xff]
  %s150 = scalar_lea.vmem %s1, 232
  %v151 = vld [vmem:[%s150] sm:$0xff]
  %v152 = vsub.f32 %v149, %v151
  %v153 = vmul.f32 %v152, %v152
  %v154 = vadd.f32 %v147, %v153
  %v155 = vld [vmem:[%s1] sm:$0xff]
  %s156 = scalar_lea.vmem %s1, 8
  %v157 = vld [vmem:[%s156] sm:$0xff]
  %s158 = scalar_lea.vmem %s1, 16
  %v159 = vld [vmem:[%s158] sm:$0xff]
  %s160 = scalar_lea.vmem %s1, 24
  %v161 = vld [vmem:[%s160] sm:$0xff]
  %v162 = vmul.f32 %v155, 0.14285715
  %v163 = vmul.f32 %v157, 0.14285715
  %v164 = vmul.f32 %v159, 0.5
  %v165 = vsub.f32 %v162, %v164
  %v166 = vmul.f32 %v161, 0.5
  %v167 = vsub.f32 %v163, %v166
  %v168 = vadd.f32 %v162, %v164
  %v169 = vadd.f32 %v163, %v166
  %v170 = vsub.f32 %v168, %v165
  %v171 = vsub.f32 %v169, %v167
  %v172 = vmul.f32 %v170, %v171
  %v173 = vld [vmem:[%s0] sm:$0xff]
  %s174 = scalar_lea.vmem %s0, 8
  %v175 = vld [vmem:[%s174] sm:$0xff]
  %s176 = scalar_lea.vmem %s0, 16
  %v177 = vld [vmem:[%s176] sm:$0xff]
  %s178 = scalar_lea.vmem %s0, 24
  %v179 = vld [vmem:[%s178] sm:$0xff]
  %s180 = scalar_lea.vmem %s0, 32
  %v181 = vld [vmem:[%s180] sm:$0xff]
  %v182 = vsub.f32 %v181, %v12
  %v183 = vmul.f32 %v182, %v182
  %v184 = vadd.f32 %v183, 0.0
  %v185 = vmul.f32 %v173, 0.14285715
  %v186 = vmul.f32 %v175, 0.14285715
  %v187 = vmul.f32 %v177, 0.5
  %v188 = vsub.f32 %v185, %v187
  %v189 = vmul.f32 %v179, 0.5
  %v190 = vsub.f32 %v186, %v189
  %v191 = vadd.f32 %v185, %v187
  %v192 = vadd.f32 %v186, %v189
  %v193 = vmin.f32 %v191, %v168
  %v194 = vmax.f32 %v188, %v165
  %v195 = vsub.f32 %v193, %v194
  %v196 = vmax.f32 %v195, 0.0
  %v197 = vmin.f32 %v192, %v169
  %v198 = vmax.f32 %v190, %v167
  %v199 = vsub.f32 %v197, %v198
  %v200 = vmax.f32 %v199, 0.0
  %v201 = vmul.f32 %v196, %v200
  %v202 = vsub.f32 %v191, %v188
  %v203 = vsub.f32 %v192, %v190
  %v204 = vmul.f32 %v202, %v203
  %v205 = vadd.f32 %v204, %v172
  %v206 = vsub.f32 %v205, %v201
  %v207 = vmax.f32 %v206, 1e-10
  %v208 = vrcp.pop %v207
  %v209 = vmul.f32 %v207, %v208
  %v210 = vsub.f32 1.0, %v209
  %v211 = vmul.f32 %v208, %v210
  %v212 = vadd.f32 %v208, %v211
  %vm213 = vweird.f32 %v207
  %vm214 = vweird.f32 %v208
  %vm215 = vmor %vm213, %vm214
  %v216 = vsel %vm215, %v208, %v212
  %v217 = vand.u32 2147483647, %v207
  %vm218 = vcmp.eq.f32.partialorder %v217, 8.507059e+37
  %v219 = vand.u32 %v207, 2147483648
  %v220 = vor.u32 1.1754944e-38, %v219
  %v221 = vsel %vm218, %v220, %v216
  %v222 = vmul.f32 %v201, %v221
  %s223 = scalar_lea.vmem %s0, 40
  %v224 = vld [vmem:[%s223] sm:$0xff]
  %s225 = scalar_lea.vmem %s0, 48
  %v226 = vld [vmem:[%s225] sm:$0xff]
  %s227 = scalar_lea.vmem %s0, 56
  %v228 = vld [vmem:[%s227] sm:$0xff]
  %s229 = scalar_lea.vmem %s0, 64
  %v230 = vld [vmem:[%s229] sm:$0xff]
  %s231 = scalar_lea.vmem %s0, 72
  %v232 = vld [vmem:[%s231] sm:$0xff]
  %s233 = scalar_lea.vmem %s1, 72
  %v234 = vld [vmem:[%s233] sm:$0xff]
  %v235 = vsub.f32 %v232, %v234
  %v236 = vmul.f32 %v235, %v235
  %v237 = vadd.f32 %v184, %v236
  %v238 = vmul.f32 %v224, 0.14285715
  %v239 = vmul.f32 %v226, 0.14285715
  %v240 = vmul.f32 %v228, 0.5
  %v241 = vsub.f32 %v238, %v240
  %v242 = vmul.f32 %v230, 0.5
  %v243 = vsub.f32 %v239, %v242
  %v244 = vadd.f32 %v238, %v240
  %v245 = vadd.f32 %v239, %v242
  %v246 = vmin.f32 %v244, %v168
  %v247 = vmax.f32 %v241, %v165
  %v248 = vsub.f32 %v246, %v247
  %v249 = vmax.f32 %v248, 0.0
  %v250 = vmin.f32 %v245, %v169
  %v251 = vmax.f32 %v243, %v167
  %v252 = vsub.f32 %v250, %v251
  %v253 = vmax.f32 %v252, 0.0
  %v254 = vmul.f32 %v249, %v253
  %v255 = vsub.f32 %v244, %v241
  %v256 = vsub.f32 %v245, %v243
  %v257 = vmul.f32 %v255, %v256
  %v258 = vadd.f32 %v257, %v172
  %v259 = vsub.f32 %v258, %v254
  %v260 = vmax.f32 %v259, 1e-10
  %v261 = vrcp.pop %v260
  %v262 = vmul.f32 %v260, %v261
  %v263 = vsub.f32 1.0, %v262
  %v264 = vmul.f32 %v261, %v263
  %v265 = vadd.f32 %v261, %v264
  %vm266 = vweird.f32 %v260
  %vm267 = vweird.f32 %v261
  %vm268 = vmor %vm266, %vm267
  %v269 = vsel %vm268, %v261, %v265
  %v270 = vand.u32 2147483647, %v260
  %vm271 = vcmp.eq.f32.partialorder %v270, 8.507059e+37
  %v272 = vand.u32 %v260, 2147483648
  %v273 = vor.u32 1.1754944e-38, %v272
  %v274 = vsel %vm271, %v273, %v269
  %v275 = vmul.f32 %v254, %v274
  %s276 = scalar_lea.vmem %s1, 40
  %v277 = vld [vmem:[%s276] sm:$0xff]
  %s278 = scalar_lea.vmem %s1, 48
  %v279 = vld [vmem:[%s278] sm:$0xff]
  %s280 = scalar_lea.vmem %s1, 56
  %v281 = vld [vmem:[%s280] sm:$0xff]
  %s282 = scalar_lea.vmem %s1, 64
  %v283 = vld [vmem:[%s282] sm:$0xff]
  %vm284 = vcmp.gt.f32.partialorder %v275, %v222
  %v285 = vsel %vm284, %v275, %v222
  %v286 = vsel %vm284, %v224, %v173
  %v287 = vsel %vm284, %v226, %v175
  %v288 = vsel %vm284, %v228, %v177
  %v289 = vsel %vm284, %v230, %v179
  %v290 = vsel %vm284, %v232, %v181
  %v291 = vsel %vm284, %v277, %v155
  %v292 = vsel %vm284, %v279, %v157
  %v293 = vsel %vm284, %v281, %v159
  %v294 = vsel %vm284, %v283, %v161
  %v295 = vsub.f32 %v286, %v291
  %v296 = vmul.f32 %v295, %v295
  %v297 = vsub.f32 %v287, %v292
  %v298 = vmul.f32 %v297, %v297
  %v299 = vadd.f32 %v296, %v298
  %v300 = vrsqrt.pop %v288
  %v301 = vmul.f32 %v300, %v288
  %v302 = vmul.f32 %v301, %v300
  %v303 = vmul.f32 0.5, %v302
  %v304 = vsub.f32 1.5, %v303
  %v305 = vmul.f32 %v300, %v304
  %v306 = vmul.f32 %v288, %v305
  %vm307 = vcmp.eq.f32.partialorder %v288, inf
  %v308 = vsel %vm307, %v288, %v306
  %vm309 = vcmp.eq.f32.partialorder %v288, 0.0
  %v310 = vand.u32 %v288, 2147483648
  %v311 = vsel %vm309, %v310, %v308
  %v312 = vrsqrt.pop %v293
  %v313 = vmul.f32 %v312, %v293
  %v314 = vmul.f32 %v313, %v312
  %v315 = vmul.f32 0.5, %v314
  %v316 = vsub.f32 1.5, %v315
  %v317 = vmul.f32 %v312, %v316
  %v318 = vmul.f32 %v293, %v317
  %vm319 = vcmp.eq.f32.partialorder %v293, inf
  %v320 = vsel %vm319, %v293, %v318
  %vm321 = vcmp.eq.f32.partialorder %v293, 0.0
  %v322 = vand.u32 %v293, 2147483648
  %v323 = vsel %vm321, %v322, %v320
  %v324 = vsub.f32 %v311, %v323
  %v325 = vmul.f32 %v324, %v324
  %v326 = vrsqrt.pop %v289
  %v327 = vmul.f32 %v326, %v289
  %v328 = vmul.f32 %v327, %v326
  %v329 = vmul.f32 0.5, %v328
  %v330 = vsub.f32 1.5, %v329
  %v331 = vmul.f32 %v326, %v330
  %v332 = vmul.f32 %v289, %v331
  %vm333 = vcmp.eq.f32.partialorder %v289, inf
  %v334 = vsel %vm333, %v289, %v332
  %vm335 = vcmp.eq.f32.partialorder %v289, 0.0
  %v336 = vand.u32 %v289, 2147483648
  %v337 = vsel %vm335, %v336, %v334
  %v338 = vrsqrt.pop %v294
  %v339 = vmul.f32 %v338, %v294
  %v340 = vmul.f32 %v339, %v338
  %v341 = vmul.f32 0.5, %v340
  %v342 = vsub.f32 1.5, %v341
  %v343 = vmul.f32 %v338, %v342
  %v344 = vmul.f32 %v294, %v343
  %vm345 = vcmp.eq.f32.partialorder %v294, inf
  %v346 = vsel %vm345, %v294, %v344
  %vm347 = vcmp.eq.f32.partialorder %v294, 0.0
  %v348 = vand.u32 %v294, 2147483648
  %v349 = vsel %vm347, %v348, %v346
  %v350 = vsub.f32 %v337, %v349
  %v351 = vmul.f32 %v350, %v350
  %v352 = vadd.f32 %v325, %v351
  %v353 = vsub.f32 %v290, %v285
  %v354 = vmul.f32 %v353, %v353
  %v355 = vadd.f32 %v299, %v352
  %v356 = vmul.f32 %v355, 5.0
  %v357 = vadd.f32 %v154, %v356
  %v358 = vadd.f32 %v357, %v354
  %v359 = vmul.f32 %v237, 0.5
  %v360 = vsel %vm14, %v359, 0.0
  %v361 = vsel %vm13, %v358, %v360
  %362 = vst [vmem:[%s2] sm:$0xff] %v361
  // Predicated region
  $region10: #{detect_loss_pallas.1} parent=0 // pred_check
    _
  $region11: #{detect_loss_pallas.1} parent=0 // pred_check_branch
    %364 = sbr.rel (0) target = $region13
  $region12: #{detect_loss_pallas.1} parent=0 // pred_region
    _
  $region13: #{detect_loss_pallas.1} parent=0 // pred_fallthru
    _
  // Predicated region
  $region14: #{detect_loss_pallas.1} parent=0 // pred_check
    _
  $region15: #{detect_loss_pallas.1} parent=0 // pred_check_branch
    %366 = sbr.rel (0) target = $region17
  $region16: #{detect_loss_pallas.1} parent=0 // pred_region
    _
  $region17: #{detect_loss_pallas.1} parent=0 // pred_fallthru
    _

</llo_original>
